<compile_context>
chip_gen: v7x
topology: tpu7x:2x2x1
jax: 0.10.0
libtpu: 0.0.40
codegen_flags: <defaults>
</compile_context>

<pallas_src>
import jax
import jax.numpy as jnp
from jax.experimental import pallas as pl
from jax.experimental.pallas import tpu as pltpu


def _round_up(x: int, m: int) -> int:
    return (x + m - 1) // m * m


def _cdiv(a: int, b: int) -> int:
    return -(-a // b)


# ---------------------------------------------------------------------------
# Kernel
# ---------------------------------------------------------------------------
def make_whittle_kernel(H: int, A: int, GS: int):
    """H/A are true hidden/action widths; GS is the gate lane stride."""

    def kernel(x_ref, h_ref, w1_ref, wi_ref, wh_ref, w3_ref, bias_ref,
               q_ref, hh_ref):
        f32, bf16 = jnp.float32, jnp.bfloat16

        x = x_ref[...].astype(bf16)           # (T, E)   bf16 matmul operand
        h = h_ref[...]                        # (T, H)   f32: residual path stays f32
        h_bf = h.astype(bf16)

        bias = bias_ref[...]                  # (8, BW) f32 -- a single vreg
        b1 = bias[0:1, :H]
        b_r = bias[1:2, :H]                   # b_ir + b_hr
        b_z = bias[2:3, :H]                   # b_iz + b_hz
        b_in = bias[3:4, :H]
        b_hn = bias[4:5, :H]
        b3 = bias[5:6, :A]                    # b3 + w_agent_offset

        # fc1 + ReLU (f32 MXU accumulation).
        x1 = jnp.maximum(
            jnp.dot(x, w1_ref[...], preferred_element_type=f32) + b1, 0.0)

        # Fused GRU gate matmuls: gates r/z/n at lane offsets 0 / GS / 2*GS.
        gi = jnp.dot(x1.astype(bf16), wi_ref[...], preferred_element_type=f32)
        gh = jnp.dot(h_bf, wh_ref[...], preferred_element_type=f32)

        gi_r = gi[:, 0:H]
        gi_z = gi[:, GS:GS + H]
        gi_n = gi[:, 2 * GS:2 * GS + H]
        gh_r = gh[:, 0:H]
        gh_z = gh[:, GS:GS + H]
        gh_n = gh[:, 2 * GS:2 * GS + H]

        # PyTorch GRUCell (r, z, n ordering); elementwise math kept in f32
        # (v5e has no bf16 VPU/EUP).
        r = jax.nn.sigmoid(gi_r + gh_r + b_r)
        z = jax.nn.sigmoid(gi_z + gh_z + b_z)
        n = jnp.tanh(gi_n + b_in + r * (gh_n + b_hn))
        hh = (1.0 - z) * n + z * h

        # fc3 (+ agent offset already folded into b3); store only the A real lanes.
        q = jnp.dot(hh.astype(bf16), w3_ref[...], preferred_element_type=f32)
        q_ref[...] = q[:, :A] + b3
        hh_ref[...] = hh

    return kernel


# ---------------------------------------------------------------------------
# Parameter preparation (fuse + fold + pack, done once)
# ---------------------------------------------------------------------------
def prepare_params(params, w_agent_offset):
    f32, bf16 = jnp.float32, jnp.bfloat16
    E, H = params["w1"].shape
    A = params["w3"].shape[1]

    # Gate packing: small H -> all three gates in one 128-lane tile (stride H);
    # otherwise gates sit at 128-aligned offsets.
    if H % 8 == 0 and 3 * H <= 128:
        GS, GW = H, 128
    else:
        GS = _round_up(H, 128)
        GW = 3 * GS
    AW = _round_up(A, 128)            # fc3 weight kept lane-dense; q store is (.., A)
    BW = _round_up(max(H, A), 128)    # packed-bias lane width

    def place_cols(w_list, rows, width, stride):
        out = jnp.zeros((rows, width), f32)
        for g, w in enumerate(w_list):
            w = jnp.asarray(w, f32)
            out = out.at[:w.shape[0], g * stride:g * stride + w.shape[1]].set(w)
        return out

    w1 = jnp.asarray(params["w1"], f32).astype(bf16)                        # (E, H)
    wi = place_cols([params["w_ir"], params["w_iz"], params["w_in"]],
                    H, GW, GS).astype(bf16)                                 # (H, GW)
    wh = place_cols([params["w_hr"], params["w_hz"], params["w_hn"]],
                    H, GW, GS).astype(bf16)                                 # (H, GW)
    w3 = place_cols([params["w3"]], H, AW, AW).astype(bf16)                 # (H, AW)

    def padrow(v, width):
        v = jnp.asarray(v, f32).reshape(-1)
        return jnp.zeros((width,), f32).at[:v.shape[0]].set(v)

    # NOTE: w_agent_offset must be a scalar or (A,)-broadcastable vector;
    # a per-agent offset would require a per-row add keyed by agent index.
    offset = jnp.asarray(w_agent_offset, f32)
    bias = jnp.stack([
        padrow(params["b1"], BW),
        padrow(params["b_ir"] + params["b_hr"], BW),
        padrow(params["b_iz"] + params["b_hz"], BW),
        padrow(params["b_in"], BW),
        padrow(params["b_hn"], BW),
        padrow(jnp.asarray(params["b3"], f32) + offset, BW),
        jnp.zeros((BW,), f32),
        jnp.zeros((BW,), f32),
    ])                                                                      # (8, BW)

    return {"w1": w1, "wi": wi, "wh": wh, "w3": w3, "bias": bias,
            "dims": (E, H, A, GS, GW, AW, BW)}


# ---------------------------------------------------------------------------
# Forward wrapper
# ---------------------------------------------------------------------------
def whittle_index_forward(inputs, hidden_states, prepped):
    """inputs: (b, a, E) f32; hidden_states: (b, a, H) f32."""
    b, a, e = inputs.shape
    E, H, A, GS, GW, AW, BW = prepped["dims"]
    assert e == E and hidden_states.shape[-1] == H
    N = b * a

    # Unpadded f32 views: no column inflation / dtype-cast HBM pass.
    x = inputs.reshape(N, E).astype(jnp.float32)
    h = hidden_states.reshape(N, H).astype(jnp.float32)

    # Row tiling: up to 512 rows per step; >= 2 grid steps when N is large so
    # dimension_semantics=("parallel",) can shard rows across both v7x cores.
    if N <= 512:
        num_tiles = 1
        TILE_N = _round_up(max(N, 1), 8)
    else:
        num_tiles = _cdiv(N, 512)
        TILE_N = _round_up(_cdiv(N, num_tiles), 8)
    N_pad = TILE_N * num_tiles

    if N_pad != N:  # row-only zero pad (rare; never for the common nice sizes)
        x = jnp.zeros((N_pad, E), x.dtype).at[:N].set(x)
        h = jnp.zeros((N_pad, H), h.dtype).at[:N].set(h)

    kernel = make_whittle_kernel(H, A, GS)

    q_pad, hh_pad = pl.pallas_call(
        kernel,
        out_shape=(
            jax.ShapeDtypeStruct((N_pad, A), jnp.float32),    # q  (unpadded lanes)
            jax.ShapeDtypeStruct((N_pad, H), jnp.float32),    # hh (f32, unpadded)
        ),
        grid_spec=pltpu.PrefetchScalarGridSpec(
            num_scalar_prefetch=0,
            grid=(num_tiles,),
            in_specs=[
                pl.BlockSpec((TILE_N, E), lambda i: (i, 0)),    # x (tiled rows)
                pl.BlockSpec((TILE_N, H), lambda i: (i, 0)),    # h (tiled rows)
                pl.BlockSpec((E, H), lambda i: (0, 0)),         # w1 (resident)
                pl.BlockSpec((H, GW), lambda i: (0, 0)),        # fused/packed W_i
                pl.BlockSpec((H, GW), lambda i: (0, 0)),        # fused/packed W_h
                pl.BlockSpec((H, AW), lambda i: (0, 0)),        # w3
                pl.BlockSpec((8, BW), lambda i: (0, 0)),        # packed biases
            ],
            out_specs=[
                pl.BlockSpec((TILE_N, A), lambda i: (i, 0)),
                pl.BlockSpec((TILE_N, H), lambda i: (i, 0)),
            ],
        ),
        compiler_params=pltpu.CompilerParams(
            dimension_semantics=("parallel",),          # megacore row sharding (v7x)
            vmem_limit_bytes=32 * 1024 * 1024,          # safe on v7x's 64 MiB VMEM
        ),
    )(x, h, prepped["w1"], prepped["wi"], prepped["wh"], prepped["w3"],
      prepped["bias"])

    q = q_pad[:N].reshape(b, a, A)
    hh = hh_pad[:N].reshape(b, a, H)
    return q, hh


# ---------------------------------------------------------------------------
# References
# ---------------------------------------------------------------------------
def reference_forward_f32(inputs, hidden_states, params, w_agent_offset):
    """Full-f32 pure-JAX reference mirroring the PyTorch module exactly."""
    b, a, e = inputs.shape
    H = params["w1"].shape[1]
    x = inputs.reshape(-1, e)
    h = hidden_states.reshape(-1, H)
    x1 = jax.nn.relu(x @ params["w1"] + params["b1"])
    gi_r = x1 @ params["w_ir"] + params["b_ir"]
    gi_z = x1 @ params["w_iz"] + params["b_iz"]
    gi_n = x1 @ params["w_in"] + params["b_in"]
    gh_r = h @ params["w_hr"] + params["b_hr"]
    gh_z = h @ params["w_hz"] + params["b_hz"]
    gh_n = h @ params["w_hn"] + params["b_hn"]
    r = jax.nn.sigmoid(gi_r + gh_r)
    z = jax.nn.sigmoid(gi_z + gh_z)
    n = jnp.tanh(gi_n + r * gh_n)
    hh = (1.0 - z) * n + z * h
    q = hh @ params["w3"] + params["b3"] + w_agent_offset
    return q.reshape(b, a, -1), hh.reshape(b, a, H)


def reference_forward_mirrored(inputs, hidden_states, prepped):
    """Plain-JAX replica of the kernel math (same bf16 rounding points)."""
    b, a, e = inputs.shape
    E, H, A, GS, GW, AW, BW = prepped["dims"]
    N = b * a
    f32, bf16 = jnp.float32, jnp.bfloat16

    x = inputs.reshape(N, E).astype(f32).astype(bf16)
    h = hidden_states.reshape(N, H).astype(f32)
    h_bf = h.astype(bf16)

    bias = prepped["bias"]
    b1, b_r, b_z = bias[0:1, :H], bias[1:2, :H], bias[2:3, :H]
    b_in, b_hn, b3 = bias[3:4, :H], bias[4:5, :H], bias[5:6, :A]

    x1 = jnp.maximum(jnp.dot(x, prepped["w1"], preferred_element_type=f32) + b1, 0.0)
    gi = jnp.dot(x1.astype(bf16), prepped["wi"], preferred_element_type=f32)
    gh = jnp.dot(h_bf, prepped["wh"], preferred_element_type=f32)
    r = jax.nn.sigmoid(gi[:, 0:H] + gh[:, 0:H] + b_r)
    z = jax.nn.sigmoid(gi[:, GS:GS + H] + gh[:, GS:GS + H] + b_z)
    n = jnp.tanh(gi[:, 2 * GS:2 * GS + H] + b_in + r * (gh[:, 2 * GS:2 * GS + H] + b_hn))
    hh = (1.0 - z) * n + z * h
    q = jnp.dot(hh.astype(bf16), prepped["w3"], preferred_element_type=f32)[:, :A] + b3
    return q.reshape(b, a, A), hh.reshape(b, a, H)


# ---------------------------------------------------------------------------
# Synthetic init (shapes match nn.Linear / nn.GRUCell, stored transposed)
# ---------------------------------------------------------------------------
def init_params(key, input_shape, hidden_dim, n_actions):
    ks = jax.random.split(key, 16)
    scale = 0.1

    def w(k, shape):
        return (scale * jax.random.normal(k, shape)).astype(jnp.float32)

    H, E, A = hidden_dim, input_shape, n_actions - 1
    return {
        "w1": w(ks[0], (E, H)), "b1": w(ks[1], (1, H)),
        "w_ir": w(ks[2], (H, H)), "w_iz": w(ks[3], (H, H)), "w_in": w(ks[4], (H, H)),
        "w_hr": w(ks[5], (H, H)), "w_hz": w(ks[6], (H, H)), "w_hn": w(ks[7], (H, H)),
        "b_ir": w(ks[8], (1, H)), "b_iz": w(ks[9], (1, H)), "b_in": w(ks[10], (1, H)),
        "b_hr": w(ks[11], (1, H)), "b_hz": w(ks[12], (1, H)), "b_hn": w(ks[13], (1, H)),
        "w3": w(ks[14], (H, A)), "b3": w(ks[15], (1, A)),
    }


if __name__ == "__main__":
    # batch=2, agents=4, obs dim=32, whittle_hidden_dim=32, n_actions=5 (-> q dim 4)
    b, a, e = 2, 4, 32
    hidden_dim = 32
    n_actions = 5
    w_agent_offset = 0.5

    key = jax.random.PRNGKey(0)
    k_in, k_h, k_p = jax.random.split(key, 3)

    inputs = jax.random.normal(k_in, (b, a, e), dtype=jnp.float32)
    hidden_states = jax.random.normal(k_h, (b, a, hidden_dim), dtype=jnp.float32)
    params = init_params(k_p, e, hidden_dim, n_actions)

    prepped = prepare_params(params, w_agent_offset)

    q, hh = whittle_index_forward(inputs, hidden_states, prepped)
    q = jax.block_until_ready(q)
    hh = jax.block_until_ready(hh)
    assert q.shape == (b, a, n_actions - 1) and hh.shape == (b, a, hidden_dim)

    # 1) Tight check against a plain-JAX replica of the exact kernel math.
    q_m, hh_m = reference_forward_mirrored(inputs, hidden_states, prepped)
    assert jnp.allclose(q, q_m, atol=1e-3, rtol=1e-3)
    assert jnp.allclose(hh, hh_m, atol=1e-3, rtol=1e-3)

    # 2) Semantic check against the full-f32 PyTorch-equivalent reference
    #    (looser tolerance because matmul operands are bf16 in the kernel).
    q_f, hh_f = reference_forward_f32(inputs, hidden_states, params, w_agent_offset)
    assert jnp.allclose(q, q_f, atol=5e-2, rtol=5e-2)
    assert jnp.allclose(hh, hh_f, atol=5e-2, rtol=5e-2)

    print("KERNEL_OK")
</pallas_src>

<mosaic_0001>
module attributes {stable_mosaic.version = 11 : i64} {
  func.func @kernel(%arg0: i32, %arg1: memref<8x32xf32, #tpu.memory_space<vmem>>, %arg2: memref<8x32xf32, #tpu.memory_space<vmem>>, %arg3: memref<32x32xbf16, #tpu.memory_space<vmem>>, %arg4: memref<32x128xbf16, #tpu.memory_space<vmem>>, %arg5: memref<32x128xbf16, #tpu.memory_space<vmem>>, %arg6: memref<32x128xbf16, #tpu.memory_space<vmem>>, %arg7: memref<8x128xf32, #tpu.memory_space<vmem>>, %arg8: memref<8x4xf32, #tpu.memory_space<vmem>>, %arg9: memref<8x32xf32, #tpu.memory_space<vmem>>) attributes {dimension_semantics = [#tpu.dimension_semantics<parallel>], iteration_bounds = array<i64: 1>, scalar_prefetch = 0 : i64, scratch_operands = 0 : i64, tpu.core_type = #tpu.core_type<tc>, window_params = [{transform_indices = @transform_0, window_bounds = array<i64: 8, 32>}, {transform_indices = @transform_1, window_bounds = array<i64: 8, 32>}, {pipeline_mode = #tpu.pipeline_mode<synchronous>, transform_indices = @transform_2, window_bounds = array<i64: 32, 32>}, {pipeline_mode = #tpu.pipeline_mode<synchronous>, transform_indices = @transform_3, window_bounds = array<i64: 32, 128>}, {pipeline_mode = #tpu.pipeline_mode<synchronous>, transform_indices = @transform_4, window_bounds = array<i64: 32, 128>}, {pipeline_mode = #tpu.pipeline_mode<synchronous>, transform_indices = @transform_5, window_bounds = array<i64: 32, 128>}, {pipeline_mode = #tpu.pipeline_mode<synchronous>, transform_indices = @transform_6, window_bounds = array<i64: 8, 128>}, {transform_indices = @transform_7, window_bounds = array<i64: 8, 4>}, {transform_indices = @transform_8, window_bounds = array<i64: 8, 32>}]} {
    %c0 = arith.constant 0 : index
    %c0_0 = arith.constant 0 : index
    %0 = vector.load %arg1[%c0, %c0_0] : memref<8x32xf32, #tpu.memory_space<vmem>>, vector<8x32xf32>
    %1 = arith.truncf %0 : vector<8x32xf32> to vector<8x32xbf16>
    %c0_1 = arith.constant 0 : index
    %c0_2 = arith.constant 0 : index
    %2 = vector.load %arg2[%c0_1, %c0_2] : memref<8x32xf32, #tpu.memory_space<vmem>>, vector<8x32xf32>
    %3 = arith.truncf %2 : vector<8x32xf32> to vector<8x32xbf16>
    %c0_3 = arith.constant 0 : index
    %c0_4 = arith.constant 0 : index
    %4 = vector.load %arg7[%c0_3, %c0_4] : memref<8x128xf32, #tpu.memory_space<vmem>>, vector<8x128xf32>
    %5 = vector.extract_strided_slice %4 {offsets = [0, 0], sizes = [1, 32], strides = [1, 1]} : vector<8x128xf32> to vector<1x32xf32>
    %6 = vector.extract_strided_slice %4 {offsets = [1, 0], sizes = [1, 32], strides = [1, 1]} : vector<8x128xf32> to vector<1x32xf32>
    %7 = vector.extract_strided_slice %4 {offsets = [2, 0], sizes = [1, 32], strides = [1, 1]} : vector<8x128xf32> to vector<1x32xf32>
    %8 = vector.extract_strided_slice %4 {offsets = [3, 0], sizes = [1, 32], strides = [1, 1]} : vector<8x128xf32> to vector<1x32xf32>
    %9 = vector.extract_strided_slice %4 {offsets = [4, 0], sizes = [1, 32], strides = [1, 1]} : vector<8x128xf32> to vector<1x32xf32>
    %10 = vector.extract_strided_slice %4 {offsets = [5, 0], sizes = [1, 4], strides = [1, 1]} : vector<8x128xf32> to vector<1x4xf32>
    %c0_5 = arith.constant 0 : index
    %c0_6 = arith.constant 0 : index
    %11 = vector.load %arg3[%c0_5, %c0_6] : memref<32x32xbf16, #tpu.memory_space<vmem>>, vector<32x32xbf16>
    %cst = arith.constant dense<0.000000e+00> : vector<8x32xf32>
    %12 = tpu.matmul %1, %11, %cst {dimension_numbers = #tpu.dot_dimension_numbers<[1], [0], [0], [1], [0, 0, 1, 1], [], []>} : vector<8x32xbf16>, vector<32x32xbf16>, vector<8x32xf32> -> vector<8x32xf32>
    %13 = vector.broadcast %5 : vector<1x32xf32> to vector<8x32xf32>
    %14 = arith.addf %12, %13 : vector<8x32xf32>
    %cst_7 = arith.constant 0.000000e+00 : f32
    %15 = vector.broadcast %cst_7 : f32 to vector<8x32xf32>
    %16 = arith.maximumf %14, %15 : vector<8x32xf32>
    %17 = arith.truncf %16 : vector<8x32xf32> to vector<8x32xbf16>
    %c0_8 = arith.constant 0 : index
    %c0_9 = arith.constant 0 : index
    %18 = vector.load %arg4[%c0_8, %c0_9] : memref<32x128xbf16, #tpu.memory_space<vmem>>, vector<32x128xbf16>
    %cst_10 = arith.constant dense<0.000000e+00> : vector<8x128xf32>
    %19 = tpu.matmul %17, %18, %cst_10 {dimension_numbers = #tpu.dot_dimension_numbers<[1], [0], [0], [1], [0, 0, 1, 1], [], []>} : vector<8x32xbf16>, vector<32x128xbf16>, vector<8x128xf32> -> vector<8x128xf32>
    %c0_11 = arith.constant 0 : index
    %c0_12 = arith.constant 0 : index
    %20 = vector.load %arg5[%c0_11, %c0_12] : memref<32x128xbf16, #tpu.memory_space<vmem>>, vector<32x128xbf16>
    %cst_13 = arith.constant dense<0.000000e+00> : vector<8x128xf32>
    %21 = tpu.matmul %3, %20, %cst_13 {dimension_numbers = #tpu.dot_dimension_numbers<[1], [0], [0], [1], [0, 0, 1, 1], [], []>} : vector<8x32xbf16>, vector<32x128xbf16>, vector<8x128xf32> -> vector<8x128xf32>
    %22 = vector.extract_strided_slice %19 {offsets = [0, 0], sizes = [8, 32], strides = [1, 1]} : vector<8x128xf32> to vector<8x32xf32>
    %23 = vector.extract_strided_slice %19 {offsets = [0, 32], sizes = [8, 32], strides = [1, 1]} : vector<8x128xf32> to vector<8x32xf32>
    %24 = vector.extract_strided_slice %19 {offsets = [0, 64], sizes = [8, 32], strides = [1, 1]} : vector<8x128xf32> to vector<8x32xf32>
    %25 = vector.extract_strided_slice %21 {offsets = [0, 0], sizes = [8, 32], strides = [1, 1]} : vector<8x128xf32> to vector<8x32xf32>
    %26 = vector.extract_strided_slice %21 {offsets = [0, 32], sizes = [8, 32], strides = [1, 1]} : vector<8x128xf32> to vector<8x32xf32>
    %27 = vector.extract_strided_slice %21 {offsets = [0, 64], sizes = [8, 32], strides = [1, 1]} : vector<8x128xf32> to vector<8x32xf32>
    %28 = arith.addf %22, %25 : vector<8x32xf32>
    %29 = vector.broadcast %6 : vector<1x32xf32> to vector<8x32xf32>
    %30 = arith.addf %28, %29 : vector<8x32xf32>
    %31 = arith.negf %30 : vector<8x32xf32>
    %32 = math.exp %31 : vector<8x32xf32>
    %cst_14 = arith.constant 1.000000e+00 : f32
    %33 = vector.broadcast %cst_14 : f32 to vector<8x32xf32>
    %34 = arith.addf %33, %32 : vector<8x32xf32>
    %35 = arith.divf %33, %34 : vector<8x32xf32>
    %36 = arith.addf %23, %26 : vector<8x32xf32>
    %37 = vector.broadcast %7 : vector<1x32xf32> to vector<8x32xf32>
    %38 = arith.addf %36, %37 : vector<8x32xf32>
    %39 = arith.negf %38 : vector<8x32xf32>
    %40 = math.exp %39 : vector<8x32xf32>
    %cst_15 = arith.constant 1.000000e+00 : f32
    %41 = vector.broadcast %cst_15 : f32 to vector<8x32xf32>
    %42 = arith.addf %41, %40 : vector<8x32xf32>
    %43 = arith.divf %41, %42 : vector<8x32xf32>
    %44 = vector.broadcast %8 : vector<1x32xf32> to vector<8x32xf32>
    %45 = arith.addf %24, %44 : vector<8x32xf32>
    %46 = vector.broadcast %9 : vector<1x32xf32> to vector<8x32xf32>
    %47 = arith.addf %27, %46 : vector<8x32xf32>
    %48 = arith.mulf %35, %47 : vector<8x32xf32>
    %49 = arith.addf %45, %48 : vector<8x32xf32>
    %50 = math.tanh %49 : vector<8x32xf32>
    %cst_16 = arith.constant 1.000000e+00 : f32
    %51 = vector.broadcast %cst_16 : f32 to vector<8x32xf32>
    %52 = arith.subf %51, %43 : vector<8x32xf32>
    %53 = arith.mulf %52, %50 : vector<8x32xf32>
    %54 = arith.mulf %43, %2 : vector<8x32xf32>
    %55 = arith.addf %53, %54 : vector<8x32xf32>
    %56 = arith.truncf %55 : vector<8x32xf32> to vector<8x32xbf16>
    %c0_17 = arith.constant 0 : index
    %c0_18 = arith.constant 0 : index
    %57 = vector.load %arg6[%c0_17, %c0_18] : memref<32x128xbf16, #tpu.memory_space<vmem>>, vector<32x128xbf16>
    %cst_19 = arith.constant dense<0.000000e+00> : vector<8x128xf32>
    %58 = tpu.matmul %56, %57, %cst_19 {dimension_numbers = #tpu.dot_dimension_numbers<[1], [0], [0], [1], [0, 0, 1, 1], [], []>} : vector<8x32xbf16>, vector<32x128xbf16>, vector<8x128xf32> -> vector<8x128xf32>
    %59 = vector.extract_strided_slice %58 {offsets = [0, 0], sizes = [8, 4], strides = [1, 1]} : vector<8x128xf32> to vector<8x4xf32>
    %60 = vector.broadcast %10 : vector<1x4xf32> to vector<8x4xf32>
    %61 = arith.addf %59, %60 : vector<8x4xf32>
    %c0_20 = arith.constant 0 : index
    %c0_21 = arith.constant 0 : index
    %62 = vector.load %arg8[%c0_20, %c0_21] : memref<8x4xf32, #tpu.memory_space<vmem>>, vector<8x4xf32>
    tpu.vector_store %arg8[%c0_20, %c0_21], %61 {strides = array<i32>} : memref<8x4xf32, #tpu.memory_space<vmem>>, vector<8x4xf32>,
    %c0_22 = arith.constant 0 : index
    %c0_23 = arith.constant 0 : index
    %63 = vector.load %arg9[%c0_22, %c0_23] : memref<8x32xf32, #tpu.memory_space<vmem>>, vector<8x32xf32>
    tpu.vector_store %arg9[%c0_22, %c0_23], %55 {strides = array<i32>} : memref<8x32xf32, #tpu.memory_space<vmem>>, vector<8x32xf32>,
    return
  }
  func.func @transform_0(%arg0: i32) -> (i32, i32) {
    %c0_i32 = arith.constant 0 : i32
    %c0_i32_0 = arith.constant 0 : i32
    return %arg0, %c0_i32 : i32, i32
  }
  func.func @transform_1(%arg0: i32) -> (i32, i32) {
    %c0_i32 = arith.constant 0 : i32
    %c0_i32_0 = arith.constant 0 : i32
    return %arg0, %c0_i32 : i32, i32
  }
  func.func @transform_2(%arg0: i32) -> (i32, i32) {
    %c0_i32 = arith.constant 0 : i32
    %c0_i32_0 = arith.constant 0 : i32
    %c0_i32_1 = arith.constant 0 : i32
    return %c0_i32, %c0_i32_0 : i32, i32
  }
  func.func @transform_3(%arg0: i32) -> (i32, i32) {
    %c0_i32 = arith.constant 0 : i32
    %c0_i32_0 = arith.constant 0 : i32
    %c0_i32_1 = arith.constant 0 : i32
    return %c0_i32, %c0_i32_0 : i32, i32
  }
  func.func @transform_4(%arg0: i32) -> (i32, i32) {
    %c0_i32 = arith.constant 0 : i32
    %c0_i32_0 = arith.constant 0 : i32
    %c0_i32_1 = arith.constant 0 : i32
    return %c0_i32, %c0_i32_0 : i32, i32
  }
  func.func @transform_5(%arg0: i32) -> (i32, i32) {
    %c0_i32 = arith.constant 0 : i32
    %c0_i32_0 = arith.constant 0 : i32
    %c0_i32_1 = arith.constant 0 : i32
    return %c0_i32, %c0_i32_0 : i32, i32
  }
  func.func @transform_6(%arg0: i32) -> (i32, i32) {
    %c0_i32 = arith.constant 0 : i32
    %c0_i32_0 = arith.constant 0 : i32
    %c0_i32_1 = arith.constant 0 : i32
    return %c0_i32, %c0_i32_0 : i32, i32
  }
  func.func @transform_7(%arg0: i32) -> (i32, i32) {
    %c0_i32 = arith.constant 0 : i32
    %c0_i32_0 = arith.constant 0 : i32
    return %arg0, %c0_i32 : i32, i32
  }
  func.func @transform_8(%arg0: i32) -> (i32, i32) {
    %c0_i32 = arith.constant 0 : i32
    %c0_i32_0 = arith.constant 0 : i32
    return %arg0, %c0_i32 : i32, i32
  }
}

</mosaic_0001>

<llo_original>
// kernel: tpu_custom_call.1
$region0: #{tpu_custom_call.1}
  #allocation0 [shape = 'u32[]', space=smem, size = 0x4, offset = 0x4, fixed_abs, tag = 'smem constant byte address 0x4 - core index']
  #allocation1 [shape = 'u32[144,128]{1,0:T(1,128)}', space=vmem, size = 0x12000, scoped, tag = 'internal scratch']
  %s0 = inlined_call_operand.hbm [shape: f32[8,32], index: 0, kind: input, shape index: {}]
  %s1 = inlined_call_operand.hbm [shape: f32[8,32], index: 1, kind: input, shape index: {}]
  %s2 = inlined_call_operand.hbm [shape: bf16[32,32], index: 2, kind: input, shape index: {}]
  %s3 = inlined_call_operand.hbm [shape: bf16[32,128], index: 3, kind: input, shape index: {}]
  %s4 = inlined_call_operand.hbm [shape: bf16[32,128], index: 4, kind: input, shape index: {}]
  %s5 = inlined_call_operand.vmem [shape: bf16[32,128], index: 5, kind: input, shape index: {}]
  %s6 = inlined_call_operand.hbm [shape: f32[8,128], index: 6, kind: input, shape index: {}]
  %s7 = inlined_call_operand.vmem [shape: f32[8,4], index: 7, kind: output, shape index: {0}]
  %s8 = inlined_call_operand.hbm [shape: f32[8,32], index: 8, kind: output, shape index: {1}]
  %9 = xla_tuple %s7, %s8
  %s10 = sld [smem:[#allocation0]]
  $region70: #{tpu_custom_call.1} parent=0
    _
  %s12 = ssub.s32 1, %s10
  %s13 = scalar_select 0, %s12, %s10
  $region1: #{tpu_custom_call.1} parent=0
    #allocation2 [shape = 'u8[4096]{0}', space=vmem, size = 0x1000, scoped, tag = 'input window, operand 0, single buffered']
    #allocation3 [shape = 's32[1]{0}', space=sflag, size = 0x4, scoped, tag = 'scoped memory for tpu_custom_call.1']
    #allocation4 [shape = 's32[1]{0}', space=sflag, size = 0x4, scoped, tag = 'scoped memory for tpu_custom_call.1']
    #allocation5 [shape = 'u8[4096]{0}', space=vmem, size = 0x1000, scoped, tag = 'input window, operand 1, single buffered']
    #allocation6 [shape = 's32[1]{0}', space=sflag, size = 0x4, scoped, tag = 'scoped memory for tpu_custom_call.1']
    #allocation7 [shape = 'u8[8192]{0}', space=vmem, size = 0x2000, scoped, tag = 'input window, operand 2, single buffered']
    #allocation8 [shape = 'u8[8192]{0}', space=vmem, size = 0x2000, scoped, tag = 'input window, operand 3, single buffered']
    #allocation9 [shape = 's32[1]{0}', space=sflag, size = 0x4, scoped, tag = 'scoped memory for tpu_custom_call.1']
    #allocation10 [shape = 'u8[8192]{0}', space=vmem, size = 0x2000, scoped, tag = 'input window, operand 4, single buffered']
    #allocation11 [shape = 'u8[4096]{0}', space=vmem, size = 0x1000, scoped, tag = 'input window, operand 6, single buffered']
    #allocation12 [shape = 's32[1]{0}', space=sflag, size = 0x4, scoped, tag = 'scoped memory for tpu_custom_call.1']
    #allocation13 [shape = 'u8[4096]{0}', space=vmem, size = 0x1000, scoped, tag = 'output window, operand 1, single buffered']
    %14 = vsyncpa [#allocation3], 0
    %15 = vsyncpa [#allocation6], 0
    %16 = vsyncpa [#allocation9], 0
    %17 = vsyncpa [#allocation12], 0
    %18 = vsyncpa [#allocation4], 0
    // Predicated region
    $region2: #{tpu_custom_call.1} parent=1 // pred_check
      _
    $region3: #{tpu_custom_call.1} parent=1 // pred_check_branch
      %20 = sbr.rel (0) target = $region5
    $region4: #{tpu_custom_call.1} parent=1 // pred_region
      %s22 = ssub.s32 128, 128
      %23 = vsyncadd [#allocation3], %s22
      %s25 = sshll.u32 [#allocation2], 4
      %s26 = int_to_ptr.vmem [resolvable:$true] %s25
      %28 = dma.hbm_to_vmem [thread:$0]  %s0, 128, %s26, [#allocation3]
    $region5: #{tpu_custom_call.1} parent=1 // pred_fallthru
      _
    // Predicated region
    $region6: #{tpu_custom_call.1} parent=1 // pred_check
      _
    $region7: #{tpu_custom_call.1} parent=1 // pred_check_branch
      %30 = sbr.rel (0) target = $region9
    $region8: #{tpu_custom_call.1} parent=1 // pred_region
      %s32 = ssub.s32 128, 128
      %33 = vsyncadd [#allocation6], %s32
      %s35 = sshll.u32 [#allocation5], 4
      %s36 = int_to_ptr.vmem [resolvable:$true] %s35
      %38 = dma.hbm_to_vmem [thread:$0]  %s1, 128, %s36, [#allocation6]
    $region9: #{tpu_custom_call.1} parent=1 // pred_fallthru
      _
    // Predicated region
    $region10: #{tpu_custom_call.1} parent=1 // pred_check
      _
    $region11: #{tpu_custom_call.1} parent=1 // pred_check_branch
      %40 = sbr.rel (0) target = $region13
    $region12: #{tpu_custom_call.1} parent=1 // pred_region
      %s42 = ssub.s32 256, 256
      %43 = vsyncadd [#allocation6], %s42
      %s44 = sshll.u32 [#allocation7], 4
      %s45 = int_to_ptr.vmem [resolvable:$true] %s44
      %50 = dma.hbm_to_vmem [thread:$0]  %s2, 256, %s45, [#allocation6], 64, 64, 4
    $region13: #{tpu_custom_call.1} parent=1 // pred_fallthru
      _
    // Predicated region
    $region14: #{tpu_custom_call.1} parent=1 // pred_check
      _
    $region15: #{tpu_custom_call.1} parent=1 // pred_check_branch
      %52 = sbr.rel (0) target = $region17
    $region16: #{tpu_custom_call.1} parent=1 // pred_region
      %s54 = ssub.s32 256, 256
      %55 = vsyncadd [#allocation9], %s54
      %s56 = sshll.u32 [#allocation8], 4
      %s57 = int_to_ptr.vmem [resolvable:$true] %s56
      %62 = dma.hbm_to_vmem [thread:$0]  %s3, 256, %s57, [#allocation9], 64, 64, 4
    $region17: #{tpu_custom_call.1} parent=1 // pred_fallthru
      _
    // Predicated region
    $region18: #{tpu_custom_call.1} parent=1 // pred_check
      _
    $region19: #{tpu_custom_call.1} parent=1 // pred_check_branch
      %64 = sbr.rel (0) target = $region21
    $region20: #{tpu_custom_call.1} parent=1 // pred_region
      %s66 = ssub.s32 256, 256
      %67 = vsyncadd [#allocation9], %s66
      %s68 = sshll.u32 [#allocation10], 4
      %s69 = int_to_ptr.vmem [resolvable:$true] %s68
      %74 = dma.hbm_to_vmem [thread:$0]  %s4, 256, %s69, [#allocation9], 64, 64, 4
    $region21: #{tpu_custom_call.1} parent=1 // pred_fallthru
      _
    // Predicated region
    $region22: #{tpu_custom_call.1} parent=1 // pred_check
      _
    $region23: #{tpu_custom_call.1} parent=1 // pred_check_branch
      %76 = sbr.rel (0) target = $region25
    $region24: #{tpu_custom_call.1} parent=1 // pred_region
      _
    $region25: #{tpu_custom_call.1} parent=1 // pred_fallthru
      _
    // Predicated region
    $region26: #{tpu_custom_call.1} parent=1 // pred_check
      _
    $region27: #{tpu_custom_call.1} parent=1 // pred_check_branch
      %78 = sbr.rel (0) target = $region29
    $region28: #{tpu_custom_call.1} parent=1 // pred_region
      %s80 = ssub.s32 128, 128
      %81 = vsyncadd [#allocation12], %s80
      %s83 = sshll.u32 [#allocation11], 4
      %s84 = int_to_ptr.vmem [resolvable:$true] %s83
      %86 = dma.hbm_to_vmem [thread:$0]  %s6, 128, %s84, [#allocation12]
    $region29: #{tpu_custom_call.1} parent=1 // pred_fallthru
      _
    // Predicated region
    $region30: #{tpu_custom_call.1} parent=1 // pred_check
      _
    $region31: #{tpu_custom_call.1} parent=1 // pred_check_branch
      %88 = sbr.rel (0) target = $region33
    $region32: #{tpu_custom_call.1} parent=1 // pred_region
      %89 = dma.done [#allocation3], 128
    $region33: #{tpu_custom_call.1} parent=1 // pred_fallthru
      _
    // Predicated region
    $region34: #{tpu_custom_call.1} parent=1 // pred_check
      _
    $region35: #{tpu_custom_call.1} parent=1 // pred_check_branch
      %91 = sbr.rel (0) target = $region37
    $region36: #{tpu_custom_call.1} parent=1 // pred_region
      %92 = dma.done [#allocation6], 128
    $region37: #{tpu_custom_call.1} parent=1 // pred_fallthru
      _
    // Predicated region
    $region38: #{tpu_custom_call.1} parent=1 // pred_check
      _
    $region39: #{tpu_custom_call.1} parent=1 // pred_check_branch
      %94 = sbr.rel (0) target = $region41
    $region40: #{tpu_custom_call.1} parent=1 // pred_region
      %95 = dma.done [#allocation6], 256
    $region41: #{tpu_custom_call.1} parent=1 // pred_fallthru
      _
    // Predicated region
    $region42: #{tpu_custom_call.1} parent=1 // pred_check
      _
    $region43: #{tpu_custom_call.1} parent=1 // pred_check_branch
      %97 = sbr.rel (0) target = $region45
    $region44: #{tpu_custom_call.1} parent=1 // pred_region
      %98 = dma.done [#allocation9], 256
    $region45: #{tpu_custom_call.1} parent=1 // pred_fallthru
      _
    // Predicated region
    $region46: #{tpu_custom_call.1} parent=1 // pred_check
      _
    $region47: #{tpu_custom_call.1} parent=1 // pred_check_branch
      %100 = sbr.rel (0) target = $region49
    $region48: #{tpu_custom_call.1} parent=1 // pred_region
      %101 = dma.done [#allocation9], 256
    $region49: #{tpu_custom_call.1} parent=1 // pred_fallthru
      _
    // Predicated region
    $region50: #{tpu_custom_call.1} parent=1 // pred_check
      _
    $region51: #{tpu_custom_call.1} parent=1 // pred_check_branch
      %103 = sbr.rel (0) target = $region53
    $region52: #{tpu_custom_call.1} parent=1 // pred_region
      %104 = dma.done [#allocation12], 128
    $region53: #{tpu_custom_call.1} parent=1 // pred_fallthru
      _
    %v106 = vld [vmem:[#allocation2] sm:$0xff]
    %v107 = vpack.c.bf16 %v106, %v106
    %v108 = vld [vmem:[#allocation5] sm:$0xff]
    %v109 = vpack.c.bf16 %v108, %v108
    %v110 = vld [vmem:[#allocation11] sm:$0xff]
    %v111 = vld [vmem:[#allocation7] sm:$0xf]
    %v112 = vld [vmem:[#allocation7 + $0x4] sm:$0xf]
    %v113 = vld [vmem:[#allocation7 + $0x8] sm:$0xf]
    %v114 = vld [vmem:[#allocation7 + $0xc] sm:$0xf]
    %v115 = vlaneseq
    %v116 = vshrl.u32 %v115, 7
    %v117 = vsub.s32 0, %v116
    %v118 = vrot.slane %v110, %v117
    %v123 = vunpack.c.l.b16 %v111
    %v124 = vunpack.c.l.b16 %v112
    %v125 = vunpack.c.l.b16 %v113
    %v126 = vunpack.c.l.b16 %v114
    %v127 = vpack.c.b16 %v124, %v123
    %v128 = vpack.c.b16 %v126, %v125
    %vm131 = vcmask 261120
    %v133 = vsel %vm131, %v107, 0
    %135 = vmatprep.subr.bf16.mxu0 0
    %136 = vmatpush1.bf16.msra.mxu0 %v127
    %137 = vmatprep.subr.bf16.mxu0 0
    %138 = vmatpush1.bf16.msra.mxu0 %v128
    %139 = vmatprep.subr.bf16.mxu0 0
    %140 = vmatpush1.bf16.msra.mxu0 0
    %141 = vmatprep.subr.bf16.mxu0 0
    %142 = vmatpush1.bf16.msra.mxu0 0
    %143 = vmatprep.subr.bf16.mxu0 0
    %144 = vmatpush1.bf16.msra.mxu0 0
    %145 = vmatprep.subr.bf16.mxu0 0
    %146 = vmatpush1.bf16.msra.mxu0 0
    %147 = vmatprep.subr.bf16.mxu0 0
    %148 = vmatpush1.bf16.msra.mxu0 0
    %149 = vmatprep.subr.bf16.mxu0 0
    %150 = vmatpush1.bf16.msra.mxu0 0
    %151 = vmatprep.subr.bf16.mxu0 0
    %152 = vmatpush1.bf16.msra.mxu0 0
    %153 = vmatprep.subr.bf16.mxu0 0
    %154 = vmatpush1.bf16.msra.mxu0 0
    %155 = vmatprep.subr.bf16.mxu0 0
    %156 = vmatpush1.bf16.msra.mxu0 0
    %157 = vmatprep.subr.bf16.mxu0 0
    %158 = vmatpush1.bf16.msra.mxu0 0
    %159 = vmatprep.subr.bf16.mxu0 0
    %160 = vmatpush1.bf16.msra.mxu0 0
    %161 = vmatprep.subr.bf16.mxu0 0
    %162 = vmatpush1.bf16.msra.mxu0 0
    %163 = vmatprep.subr.bf16.mxu0 0
    %164 = vmatpush1.bf16.msra.mxu0 0
    %165 = vmatprep.subr.bf16.mxu0 0
    %166 = vmatpush1.bf16.msra.mxu0 0
    %167 = vmatprep.mubr.bf16.mxu0 0
    %168 = vmatmul.mubr.bf16.gmra.mrb[0].mxu0 %v133
    %v169 = vpop.f32.mrb[0].mxu0
    %v170 = vadd.f32 %v118, %v169
    %v171 = vpop.f32.mrb[0].mxu0
    %v172 = vpop.f32.mrb[0].mxu0
    %v173 = vpop.f32.mrb[0].mxu0
    %174 = vdwg.mxu0
    %v175 = vmax.f32 %v170, 0.0
    %v176 = vpack.c.bf16 %v175, %v175
    %v177 = vld [vmem:[#allocation8] sm:$0xf]
    %v178 = vld [vmem:[#allocation8 + $0x4] sm:$0xf]
    %v179 = vld [vmem:[#allocation8 + $0x8] sm:$0xf]
    %v180 = vld [vmem:[#allocation8 + $0xc] sm:$0xf]
    %v185 = vunpack.c.l.b16 %v177
    %v186 = vunpack.c.l.b16 %v178
    %v187 = vunpack.c.l.b16 %v179
    %v188 = vunpack.c.l.b16 %v180
    %v189 = vpack.c.b16 %v186, %v185
    %v190 = vpack.c.b16 %v188, %v187
    %v194 = vsel %vm131, %v176, 0
    %196 = vmatprep.subr.bf16.mxu0 0
    %197 = vmatpush1.bf16.msra.mxu0 %v189
    %198 = vmatprep.subr.bf16.mxu0 0
    %199 = vmatpush1.bf16.msra.mxu0 %v190
    %200 = vmatprep.subr.bf16.mxu0 0
    %201 = vmatpush1.bf16.msra.mxu0 0
    %202 = vmatprep.subr.bf16.mxu0 0
    %203 = vmatpush1.bf16.msra.mxu0 0
    %204 = vmatprep.subr.bf16.mxu0 0
    %205 = vmatpush1.bf16.msra.mxu0 0
    %206 = vmatprep.subr.bf16.mxu0 0
    %207 = vmatpush1.bf16.msra.mxu0 0
    %208 = vmatprep.subr.bf16.mxu0 0
    %209 = vmatpush1.bf16.msra.mxu0 0
    %210 = vmatprep.subr.bf16.mxu0 0
    %211 = vmatpush1.bf16.msra.mxu0 0
    %212 = vmatprep.subr.bf16.mxu0 0
    %213 = vmatpush1.bf16.msra.mxu0 0
    %214 = vmatprep.subr.bf16.mxu0 0
    %215 = vmatpush1.bf16.msra.mxu0 0
    %216 = vmatprep.subr.bf16.mxu0 0
    %217 = vmatpush1.bf16.msra.mxu0 0
    %218 = vmatprep.subr.bf16.mxu0 0
    %219 = vmatpush1.bf16.msra.mxu0 0
    %220 = vmatprep.subr.bf16.mxu0 0
    %221 = vmatpush1.bf16.msra.mxu0 0
    %222 = vmatprep.subr.bf16.mxu0 0
    %223 = vmatpush1.bf16.msra.mxu0 0
    %224 = vmatprep.subr.bf16.mxu0 0
    %225 = vmatpush1.bf16.msra.mxu0 0
    %226 = vmatprep.subr.bf16.mxu0 0
    %227 = vmatpush1.bf16.msra.mxu0 0
    %228 = vmatprep.mubr.bf16.mxu0 0
    %229 = vmatmul.mubr.bf16.gmra.mrb[0].mxu0 %v194
    %v230 = vpop.f32.mrb[0].mxu0
    %v231 = vadd.f32 0.0, %v230
    %v232 = vpop.f32.mrb[0].mxu0
    %v233 = vpop.f32.mrb[0].mxu0
    %v234 = vpop.f32.mrb[0].mxu0
    %235 = vdwg.mxu0
    %v236 = vld [vmem:[#allocation10] sm:$0xf]
    %v237 = vld [vmem:[#allocation10 + $0x4] sm:$0xf]
    %v238 = vld [vmem:[#allocation10 + $0x8] sm:$0xf]
    %v239 = vld [vmem:[#allocation10 + $0xc] sm:$0xf]
    %v244 = vunpack.c.l.b16 %v236
    %v245 = vunpack.c.l.b16 %v237
    %v246 = vunpack.c.l.b16 %v238
    %v247 = vunpack.c.l.b16 %v239
    %v248 = vpack.c.b16 %v245, %v244
    %v249 = vpack.c.b16 %v247, %v246
    %v253 = vsel %vm131, %v109, 0
    %255 = vmatprep.subr.bf16.mxu0 0
    %256 = vmatpush1.bf16.msra.mxu0 %v248
    %257 = vmatprep.subr.bf16.mxu0 0
    %258 = vmatpush1.bf16.msra.mxu0 %v249
    %259 = vmatprep.subr.bf16.mxu0 0
    %260 = vmatpush1.bf16.msra.mxu0 0
    %261 = vmatprep.subr.bf16.mxu0 0
    %262 = vmatpush1.bf16.msra.mxu0 0
    %263 = vmatprep.subr.bf16.mxu0 0
    %264 = vmatpush1.bf16.msra.mxu0 0
    %265 = vmatprep.subr.bf16.mxu0 0
    %266 = vmatpush1.bf16.msra.mxu0 0
    %267 = vmatprep.subr.bf16.mxu0 0
    %268 = vmatpush1.bf16.msra.mxu0 0
    %269 = vmatprep.subr.bf16.mxu0 0
    %270 = vmatpush1.bf16.msra.mxu0 0
    %271 = vmatprep.subr.bf16.mxu0 0
    %272 = vmatpush1.bf16.msra.mxu0 0
    %273 = vmatprep.subr.bf16.mxu0 0
    %274 = vmatpush1.bf16.msra.mxu0 0
    %275 = vmatprep.subr.bf16.mxu0 0
    %276 = vmatpush1.bf16.msra.mxu0 0
    %277 = vmatprep.subr.bf16.mxu0 0
    %278 = vmatpush1.bf16.msra.mxu0 0
    %279 = vmatprep.subr.bf16.mxu0 0
    %280 = vmatpush1.bf16.msra.mxu0 0
    %281 = vmatprep.subr.bf16.mxu0 0
    %282 = vmatpush1.bf16.msra.mxu0 0
    %283 = vmatprep.subr.bf16.mxu0 0
    %284 = vmatpush1.bf16.msra.mxu0 0
    %285 = vmatprep.subr.bf16.mxu0 0
    %286 = vmatpush1.bf16.msra.mxu0 0
    %287 = vmatprep.mubr.bf16.mxu0 0
    %288 = vmatmul.mubr.bf16.gmra.mrb[0].mxu0 %v253
    %v289 = vpop.f32.mrb[0].mxu0
    %v290 = vadd.f32 0.0, %v289
    %v291 = vpop.f32.mrb[0].mxu0
    %v292 = vpop.f32.mrb[0].mxu0
    %v293 = vpop.f32.mrb[0].mxu0
    %294 = vdwg.mxu0
    %v295 = vadd.f32 %v231, %v290
    %v296 = vlaneseq
    %v297 = vshrl.u32 %v296, 7
    %v298 = vsub.s32 1, %v297
    %v299 = vrot.slane %v110, %v298
    %v300 = vadd.f32 %v295, %v299
    %v301 = vxor.u32 %v300, 2147483648
    %v302 = vmul.f32 %v301, 1.442695
    %v303 = vpow.pop %v302
    %v304 = vadd.f32 %v303, 1.0
    %v305 = vrcp.pop %v304
    %v306 = vmul.f32 1.0, %v305
    %v307 = vlaneseq
    %v308 = vshrl.u32 %v307, 7
    %v309 = vsub.s32 2, %v308
    %v310 = vrot.slane %v110, %v309
    %312 = vrot.lane.b32.xlu0 %v310, 32
    %v313 = vpop.permute.xlu0 %312
    %v315 = vadd.f32 %v295, %v313
    %v316 = vxor.u32 %v315, 2147483648
    %v317 = vmul.f32 %v316, 1.442695
    %v318 = vpow.pop %v317
    %v319 = vadd.f32 %v318, 1.0
    %v320 = vrcp.pop %v319
    %v321 = vmul.f32 1.0, %v320
    %v322 = vlaneseq
    %v323 = vshrl.u32 %v322, 7
    %v324 = vsub.s32 3, %v323
    %v325 = vrot.slane %v110, %v324
    %327 = vrot.lane.b32.xlu0 %v325, 64
    %v328 = vpop.permute.xlu0 %327
    %v330 = vadd.f32 %v231, %v328
    %v331 = vlaneseq
    %v332 = vshrl.u32 %v331, 7
    %v333 = vsub.s32 4, %v332
    %v334 = vrot.slane %v110, %v333
    %336 = vrot.lane.b32.xlu0 %v334, 64
    %v337 = vpop.permute.xlu0 %336
    %v339 = vadd.f32 %v290, %v337
    %341 = vrot.lane.b32.xlu0 %v339, 64
    %v342 = vpop.permute.xlu0 %341
    %v344 = vmul.f32 %v306, %v342
    %346 = vrot.lane.b32.xlu0 %v344, 64
    %v347 = vpop.permute.xlu0 %346
    %v349 = vadd.f32 %v330, %v347
    %v350 = vtanh.pop %v349
    %v351 = vsub.f32 1.0, %v321
    %353 = vrot.lane.b32.xlu0 %v350, 96
    %v354 = vpop.permute.xlu0 %353
    %v356 = vmul.f32 %v351, %v354
    %358 = vrot.lane.b32.xlu0 %v108, 32
    %v359 = vpop.permute.xlu0 %358
    %v361 = vmul.f32 %v321, %v359
    %v362 = vadd.f32 %v356, %v361
    %v363 = vpack.c.bf16 %v362, %v362
    %v364 = vld [vmem:[%s5] sm:$0xf]
    %v365 = vld [vmem:[%s5 + $0x4] sm:$0xf]
    %v366 = vld [vmem:[%s5 + $0x8] sm:$0xf]
    %v367 = vld [vmem:[%s5 + $0xc] sm:$0xf]
    %369 = vrot.lane.b32.xlu0 %v363, 96
    %v370 = vpop.permute.xlu0 %369
    %v375 = vunpack.c.l.b16 %v364
    %v376 = vunpack.c.l.b16 %v365
    %v377 = vunpack.c.l.b16 %v366
    %v378 = vunpack.c.l.b16 %v367
    %v379 = vpack.c.b16 %v376, %v375
    %v380 = vpack.c.b16 %v378, %v377
    %v384 = vsel %vm131, %v370, 0
    %386 = vmatprep.subr.bf16.mxu0 0
    %387 = vmatpush1.bf16.msra.mxu0 %v379
    %388 = vmatprep.subr.bf16.mxu0 0
    %389 = vmatpush1.bf16.msra.mxu0 %v380
    %390 = vmatprep.subr.bf16.mxu0 0
    %391 = vmatpush1.bf16.msra.mxu0 0
    %392 = vmatprep.subr.bf16.mxu0 0
    %393 = vmatpush1.bf16.msra.mxu0 0
    %394 = vmatprep.subr.bf16.mxu0 0
    %395 = vmatpush1.bf16.msra.mxu0 0
    %396 = vmatprep.subr.bf16.mxu0 0
    %397 = vmatpush1.bf16.msra.mxu0 0
    %398 = vmatprep.subr.bf16.mxu0 0
    %399 = vmatpush1.bf16.msra.mxu0 0
    %400 = vmatprep.subr.bf16.mxu0 0
    %401 = vmatpush1.bf16.msra.mxu0 0
    %402 = vmatprep.subr.bf16.mxu0 0
    %403 = vmatpush1.bf16.msra.mxu0 0
    %404 = vmatprep.subr.bf16.mxu0 0
    %405 = vmatpush1.bf16.msra.mxu0 0
    %406 = vmatprep.subr.bf16.mxu0 0
    %407 = vmatpush1.bf16.msra.mxu0 0
    %408 = vmatprep.subr.bf16.mxu0 0
    %409 = vmatpush1.bf16.msra.mxu0 0
    %410 = vmatprep.subr.bf16.mxu0 0
    %411 = vmatpush1.bf16.msra.mxu0 0
    %412 = vmatprep.subr.bf16.mxu0 0
    %413 = vmatpush1.bf16.msra.mxu0 0
    %414 = vmatprep.subr.bf16.mxu0 0
    %415 = vmatpush1.bf16.msra.mxu0 0
    %416 = vmatprep.subr.bf16.mxu0 0
    %417 = vmatpush1.bf16.msra.mxu0 0
    %418 = vmatprep.mubr.bf16.mxu0 0
    %419 = vmatmul.mubr.bf16.gmra.mrb[0].mxu0 %v384
    %v420 = vpop.f32.mrb[0].mxu0
    %v421 = vadd.f32 0.0, %v420
    %v422 = vpop.f32.mrb[0].mxu0
    %v423 = vpop.f32.mrb[0].mxu0
    %v424 = vpop.f32.mrb[0].mxu0
    %425 = vdwg.mxu0
    %v426 = vlaneseq
    %v427 = vshrl.u32 %v426, 7
    %v428 = vsub.s32 5, %v427
    %v429 = vrot.slane %v110, %v428
    %v430 = vadd.f32 %v421, %v429
    %vm431 = vcmask 31744
    %432 = vst.msk [vmem:[%s7] sm:$0xff] %vm431, %v430
    %434 = vrot.lane.b32.xlu0 %v362, 96
    %v435 = vpop.permute.xlu0 %434
    %437 = vst.msk [vmem:[#allocation13] sm:$0xff] %vm131, %v435
    // Predicated region
    $region54: #{tpu_custom_call.1} parent=1 // pred_check
      _
    $region55: #{tpu_custom_call.1} parent=1 // pred_check_branch
      %439 = sbr.rel (0) target = $region57
    $region56: #{tpu_custom_call.1} parent=1 // pred_region
      _
    $region57: #{tpu_custom_call.1} parent=1 // pred_fallthru
      _
    // Predicated region
    $region58: #{tpu_custom_call.1} parent=1 // pred_check
      _
    $region59: #{tpu_custom_call.1} parent=1 // pred_check_branch
      %441 = sbr.rel (0) target = $region61
    $region60: #{tpu_custom_call.1} parent=1 // pred_region
      %s443 = ssub.s32 128, 128
      %444 = vsyncadd [#allocation4], %s443
      %s446 = sshll.u32 [#allocation13], 4
      %s447 = int_to_ptr.vmem [resolvable:$true] %s446
      %449 = dma.vmem_to_hbm [thread:$0]  %s447, 128, %s8, [#allocation4]
    $region61: #{tpu_custom_call.1} parent=1 // pred_fallthru
      _
    // Predicated region
    $region62: #{tpu_custom_call.1} parent=1 // pred_check
      _
    $region63: #{tpu_custom_call.1} parent=1 // pred_check_branch
      %451 = sbr.rel (0) target = $region65
    $region64: #{tpu_custom_call.1} parent=1 // pred_region
      _
    $region65: #{tpu_custom_call.1} parent=1 // pred_fallthru
      _
    // Predicated region
    $region66: #{tpu_custom_call.1} parent=1 // pred_check
      _
    $region67: #{tpu_custom_call.1} parent=1 // pred_check_branch
      %453 = sbr.rel (0) target = $region69
    $region68: #{tpu_custom_call.1} parent=1 // pred_region
      %454 = dma.done [#allocation4], 128
    $region69: #{tpu_custom_call.1} parent=1 // pred_fallthru
      _
    %455 = vsyncpa [#allocation3], 1
    %456 = vsyncpa [#allocation6], 1
    %457 = vsyncpa [#allocation9], 1
    %458 = vsyncpa [#allocation12], 1
    %459 = vsyncpa [#allocation4], 1

</llo_original>
